<compile_context>
chip_gen: v7x
topology: tpu7x:2x2x1
jax: 0.10.0
libtpu: 0.0.40
codegen_flags: <defaults>
</compile_context>

<pallas_src>
import functools

import jax
import jax.numpy as jnp
from jax.experimental import pallas as pl
from jax.experimental.pallas import tpu as pltpu

PCOLS = 32  # packed-parameter buffer column width (widest layer output = FC2's 32)


def _round_up(x, m):
    return (x + m - 1) // m * m


def param_layout(dim_observation, act_dim):
    """Row offsets (8-aligned) of each parameter inside the packed [P_ROWS, 32] buffer."""
    conv_out = (dim_observation - 4) // 4 + 1   # Conv1d(1,1,k=4,s=4) output length
    in2 = conv_out + act_dim                    # FC2 input width (PyTorch: 8 + act_dim)
    rows = {}
    r = 0

    def add(name, nrows):
        nonlocal r
        rows[name] = r
        r = _round_up(r + nrows, 8)             # keep every slice sublane-aligned

    add("wc", dim_observation)   # [dim_observation, conv_out] block-diagonal conv weight
    add("bc", 1)                 # [1, conv_out]
    add("w2", in2)               # [in2, 32]
    add("b2", 1)                 # [1, 32]
    add("w3", 32)                # [32, 16]
    add("b3", 1)                 # [1, 16]
    add("w4", 1)                 # [1, 16]   (FC4 weight stored as a row -> VPU reduce)
    add("b4", 1)                 # [1, 1]
    return rows, r, conv_out, in2


# ----------------------------- Pallas kernel --------------------------------
def critic_kernel(obs_ref, acts_ref, p_ref, out_ref, *, dim_observation, act_dim):
    rows, _, conv_out, in2 = param_layout(dim_observation, act_dim)

    obs = obs_ref[...]          # [TB, D_obs]
    acts = acts_ref[...]        # [TB, act_dim]

    # Conv1d(1,1,kernel=4,stride=4) + ReLU as a block-diagonal matmul.
    wc = p_ref[rows["wc"]:rows["wc"] + dim_observation, 0:conv_out]
    bc = p_ref[rows["bc"]:rows["bc"] + 1, 0:conv_out]
    conv = jnp.maximum(
        jnp.dot(obs, wc, preferred_element_type=jnp.float32) + bc, 0.0)   # [TB, 8]

    # concat([conv, acts]) is a cheap lane concat (16 lanes << 1 vreg); single FC2 matmul.
    comb = jnp.concatenate([conv, acts], axis=-1)                          # [TB, 8+act_dim]
    w2 = p_ref[rows["w2"]:rows["w2"] + in2, 0:32]
    b2 = p_ref[rows["b2"]:rows["b2"] + 1, 0:32]
    h2 = jnp.maximum(
        jnp.dot(comb, w2, preferred_element_type=jnp.float32) + b2, 0.0)   # [TB, 32]

    # FC3 + ReLU
    w3 = p_ref[rows["w3"]:rows["w3"] + 32, 0:16]
    b3 = p_ref[rows["b3"]:rows["b3"] + 1, 0:16]
    h3 = jnp.maximum(
        jnp.dot(h2, w3, preferred_element_type=jnp.float32) + b3, 0.0)     # [TB, 16]

    # FC4 on the VPU/XLU (avoid a 1-column MXU matmul at the end of the chain).
    w4 = p_ref[rows["w4"]:rows["w4"] + 1, 0:16]                            # [1, 16]
    b4 = p_ref[rows["b4"]:rows["b4"] + 1, 0:1]                             # [1, 1]
    out_ref[...] = jnp.sum(h3 * w4, axis=-1, keepdims=True) + b4           # [TB, 1]


# ------------------------------- wrapper -------------------------------------
def critic_forward(obs, acts, packed_params, *, dim_observation, act_dim, tb=None):
    """obs: [B, dim_observation], acts: [B, act_dim] -> [B, 1] float32."""
    B = obs.shape[0]
    if tb is None:
        # 256 fills the v6e/v7x 256-row MXU; small batches use one 8-aligned tile.
        tb = 256 if B >= 256 else _round_up(B, 8)
    b_pad = _round_up(B, tb)
    if b_pad != B:
        pad = b_pad - B
        obs = jnp.pad(obs, ((0, pad), (0, 0)))
        acts = jnp.pad(acts, ((0, pad), (0, 0)))
    nb = b_pad // tb

    kernel = functools.partial(
        critic_kernel, dim_observation=dim_observation, act_dim=act_dim)

    out = pl.pallas_call(
        kernel,
        out_shape=jax.ShapeDtypeStruct((b_pad, 1), jnp.float32),
        grid=(nb,),
        in_specs=[
            pl.BlockSpec((tb, dim_observation), lambda i: (i, 0)),   # obs: row-tiled
            pl.BlockSpec((tb, act_dim), lambda i: (i, 0)),           # acts: row-tiled
            pl.BlockSpec(packed_params.shape, lambda i: (0, 0)),     # params: VMEM-resident
        ],
        out_specs=pl.BlockSpec((tb, 1), lambda i: (i, 0)),
        compiler_params=pltpu.CompilerParams(
            dimension_semantics=("parallel",)),                      # v7x: split tiles across TCs
    )(obs, acts, packed_params)
    return out[:B]


# --------------------------- parameter construction -------------------------
def init_params(key, n_agent, dim_observation, dim_action):
    """Deterministic synthetic init matching the PyTorch module's parameter shapes."""
    act_dim = dim_action * n_agent
    conv_out = (dim_observation - 4) // 4 + 1
    assert conv_out == 8, "Critic.FC2 hardcodes 8 conv outputs -> dim_observation must be 32"
    in2 = conv_out + act_dim

    ks = jax.random.split(key, 8)
    u = lambda k, shape, bound: jax.random.uniform(k, shape, jnp.float32, -bound, bound)

    raw = {
        "w_conv": u(ks[0], (4,), 0.5),                       # Conv1d(1,1,4) weight
        "b_conv": u(ks[1], (1,), 0.5),                       # Conv1d bias
        "w2": u(ks[2], (in2, 32), 1.0 / jnp.sqrt(in2)),      # FC2 (stored [in, out])
        "b2": u(ks[3], (32,), 1.0 / jnp.sqrt(in2)),
        "w3": u(ks[4], (32, 16), 1.0 / jnp.sqrt(32)),        # FC3
        "b3": u(ks[5], (16,), 1.0 / jnp.sqrt(32)),
        "w4": u(ks[6], (16, 1), 1.0 / jnp.sqrt(16)),         # FC4
        "b4": u(ks[7], (1,), 1.0 / jnp.sqrt(16)),
    }
    return raw, act_dim


def block_diag_conv_weight(w_conv, dim_observation, conv_out):
    wc = jnp.zeros((dim_observation, conv_out), jnp.float32)
    for j in range(conv_out):
        wc = wc.at[4 * j:4 * j + 4, j].set(w_conv)
    return wc


def pack_params(raw, dim_observation, act_dim):
    rows, total, conv_out, in2 = param_layout(dim_observation, act_dim)
    P = jnp.zeros((total, PCOLS), jnp.float32)
    wc = block_diag_conv_weight(raw["w_conv"], dim_observation, conv_out)
    P = P.at[rows["wc"]:rows["wc"] + dim_observation, :conv_out].set(wc)
    P = P.at[rows["bc"], :conv_out].set(jnp.broadcast_to(raw["b_conv"], (conv_out,)))
    P = P.at[rows["w2"]:rows["w2"] + in2, :32].set(raw["w2"])
    P = P.at[rows["b2"], :32].set(raw["b2"])
    P = P.at[rows["w3"]:rows["w3"] + 32, :16].set(raw["w3"])
    P = P.at[rows["b3"], :16].set(raw["b3"])
    P = P.at[rows["w4"], :16].set(raw["w4"].reshape(16))
    P = P.at[rows["b4"], 0].set(raw["b4"][0])
    return P


def reference_forward(obs, acts, raw, dim_observation):
    """Pure-JAX replica of the PyTorch forward (source of truth)."""
    conv_out = (dim_observation - 4) // 4 + 1
    wc = block_diag_conv_weight(raw["w_conv"], dim_observation, conv_out)
    conv = jnp.maximum(obs @ wc + raw["b_conv"], 0.0)
    comb = jnp.concatenate([conv, acts], axis=1)
    h2 = jnp.maximum(comb @ raw["w2"] + raw["b2"], 0.0)
    h3 = jnp.maximum(h2 @ raw["w3"] + raw["b3"], 0.0)
    return h3 @ raw["w4"] + raw["b4"]


# --------------------------------- main --------------------------------------
if __name__ == "__main__":
    n_agent = 2
    dim_observation = 32        # conv output length must be 8 (FC2 expects 8 + act_dim)
    dim_action = 4
    batch = 24                  # small, but exercises a 3-tile batch grid with tb=8

    key = jax.random.PRNGKey(0)
    k_obs, k_act, k_par = jax.random.split(key, 3)
    raw, act_dim = init_params(k_par, n_agent, dim_observation, dim_action)
    obs = jax.random.normal(k_obs, (batch, dim_observation), jnp.float32)
    acts = jax.random.normal(k_act, (batch, act_dim), jnp.float32)

    packed = pack_params(raw, dim_observation, act_dim)

    out = critic_forward(obs, acts, packed,
                         dim_observation=dim_observation, act_dim=act_dim, tb=8)
    out = jax.block_until_ready(out)

    ref = reference_forward(obs, acts, raw, dim_observation)
    assert out.shape == (batch, 1)
    assert jnp.allclose(out, ref, atol=1e-5, rtol=1e-5), (
        f"max abs err {jnp.max(jnp.abs(out - ref))}")

    print("KERNEL_OK")
</pallas_src>

<mosaic_0001>
module attributes {stable_mosaic.version = 11 : i64} {
  func.func @critic_kernel(%arg0: i32, %arg1: memref<8x32xf32, #tpu.memory_space<vmem>>, %arg2: memref<8x8xf32, #tpu.memory_space<vmem>>, %arg3: memref<120x32xf32, #tpu.memory_space<vmem>>, %arg4: memref<8x1xf32, #tpu.memory_space<vmem>>) attributes {dimension_semantics = [#tpu.dimension_semantics<parallel>], iteration_bounds = array<i64: 3>, scalar_prefetch = 0 : i64, scratch_operands = 0 : i64, tpu.core_type = #tpu.core_type<tc>, window_params = [{transform_indices = @transform_0, window_bounds = array<i64: 8, 32>}, {transform_indices = @transform_1, window_bounds = array<i64: 8, 8>}, {pipeline_mode = #tpu.pipeline_mode<synchronous>, transform_indices = @transform_2, window_bounds = array<i64: 120, 32>}, {transform_indices = @transform_3, window_bounds = array<i64: 8, 1>}]} {
    %c0 = arith.constant 0 : index
    %c0_0 = arith.constant 0 : index
    %0 = vector.load %arg1[%c0, %c0_0] : memref<8x32xf32, #tpu.memory_space<vmem>>, vector<8x32xf32>
    %c0_1 = arith.constant 0 : index
    %c0_2 = arith.constant 0 : index
    %1 = vector.load %arg2[%c0_1, %c0_2] : memref<8x8xf32, #tpu.memory_space<vmem>>, vector<8x8xf32>
    %c0_3 = arith.constant 0 : index
    %c0_4 = arith.constant 0 : index
    %2 = vector.load %arg3[%c0_3, %c0_4] : memref<120x32xf32, #tpu.memory_space<vmem>>, vector<32x8xf32>
    %c32 = arith.constant 32 : index
    %c0_5 = arith.constant 0 : index
    %3 = vector.load %arg3[%c32, %c0_5] : memref<120x32xf32, #tpu.memory_space<vmem>>, vector<1x8xf32>
    %cst = arith.constant dense<0.000000e+00> : vector<8x8xf32>
    %4 = tpu.matmul %0, %2, %cst {dimension_numbers = #tpu.dot_dimension_numbers<[1], [0], [0], [1], [0, 0, 1, 1], [], []>} : vector<8x32xf32>, vector<32x8xf32>, vector<8x8xf32> -> vector<8x8xf32>
    %5 = vector.broadcast %3 : vector<1x8xf32> to vector<8x8xf32>
    %6 = arith.addf %4, %5 : vector<8x8xf32>
    %cst_6 = arith.constant 0.000000e+00 : f32
    %7 = vector.broadcast %cst_6 : f32 to vector<8x8xf32>
    %8 = arith.maximumf %6, %7 : vector<8x8xf32>
    %9 = tpu.concatenate %8, %1 in 1 : vector<8x8xf32>, vector<8x8xf32> -> vector<8x16xf32>
    %c40 = arith.constant 40 : index
    %c0_7 = arith.constant 0 : index
    %10 = vector.load %arg3[%c40, %c0_7] : memref<120x32xf32, #tpu.memory_space<vmem>>, vector<16x32xf32>
    %c56 = arith.constant 56 : index
    %c0_8 = arith.constant 0 : index
    %11 = vector.load %arg3[%c56, %c0_8] : memref<120x32xf32, #tpu.memory_space<vmem>>, vector<1x32xf32>
    %cst_9 = arith.constant dense<0.000000e+00> : vector<8x32xf32>
    %12 = tpu.matmul %9, %10, %cst_9 {dimension_numbers = #tpu.dot_dimension_numbers<[1], [0], [0], [1], [0, 0, 1, 1], [], []>} : vector<8x16xf32>, vector<16x32xf32>, vector<8x32xf32> -> vector<8x32xf32>
    %13 = vector.broadcast %11 : vector<1x32xf32> to vector<8x32xf32>
    %14 = arith.addf %12, %13 : vector<8x32xf32>
    %cst_10 = arith.constant 0.000000e+00 : f32
    %15 = vector.broadcast %cst_10 : f32 to vector<8x32xf32>
    %16 = arith.maximumf %14, %15 : vector<8x32xf32>
    %c64 = arith.constant 64 : index
    %c0_11 = arith.constant 0 : index
    %17 = vector.load %arg3[%c64, %c0_11] : memref<120x32xf32, #tpu.memory_space<vmem>>, vector<32x16xf32>
    %c96 = arith.constant 96 : index
    %c0_12 = arith.constant 0 : index
    %18 = vector.load %arg3[%c96, %c0_12] : memref<120x32xf32, #tpu.memory_space<vmem>>, vector<1x16xf32>
    %cst_13 = arith.constant dense<0.000000e+00> : vector<8x16xf32>
    %19 = tpu.matmul %16, %17, %cst_13 {dimension_numbers = #tpu.dot_dimension_numbers<[1], [0], [0], [1], [0, 0, 1, 1], [], []>} : vector<8x32xf32>, vector<32x16xf32>, vector<8x16xf32> -> vector<8x16xf32>
    %20 = vector.broadcast %18 : vector<1x16xf32> to vector<8x16xf32>
    %21 = arith.addf %19, %20 : vector<8x16xf32>
    %cst_14 = arith.constant 0.000000e+00 : f32
    %22 = vector.broadcast %cst_14 : f32 to vector<8x16xf32>
    %23 = arith.maximumf %21, %22 : vector<8x16xf32>
    %c104 = arith.constant 104 : index
    %c0_15 = arith.constant 0 : index
    %24 = vector.load %arg3[%c104, %c0_15] : memref<120x32xf32, #tpu.memory_space<vmem>>, vector<1x16xf32>
    %c112 = arith.constant 112 : index
    %c0_16 = arith.constant 0 : index
    %25 = vector.load %arg3[%c112, %c0_16] : memref<120x32xf32, #tpu.memory_space<vmem>>, vector<1x1xf32>
    %26 = vector.broadcast %24 : vector<1x16xf32> to vector<8x16xf32>
    %27 = arith.mulf %23, %26 : vector<8x16xf32>
    %cst_17 = arith.constant dense<0.000000e+00> : vector<8xf32>
    %28 = vector.multi_reduction <add>, %27, %cst_17 [1] : vector<8x16xf32> to vector<8xf32>
    %29 = vector.shape_cast %28 : vector<8xf32> to vector<8x1xf32>
    %30 = vector.broadcast %25 : vector<1x1xf32> to vector<8x1xf32>
    %31 = arith.addf %29, %30 : vector<8x1xf32>
    %c0_18 = arith.constant 0 : index
    %c0_19 = arith.constant 0 : index
    %32 = vector.load %arg4[%c0_18, %c0_19] : memref<8x1xf32, #tpu.memory_space<vmem>>, vector<8x1xf32>
    tpu.vector_store %arg4[%c0_18, %c0_19], %31 {strides = array<i32>} : memref<8x1xf32, #tpu.memory_space<vmem>>, vector<8x1xf32>,
    return
  }
  func.func @transform_0(%arg0: i32) -> (i32, i32) {
    %c0_i32 = arith.constant 0 : i32
    %c0_i32_0 = arith.constant 0 : i32
    return %arg0, %c0_i32 : i32, i32
  }
  func.func @transform_1(%arg0: i32) -> (i32, i32) {
    %c0_i32 = arith.constant 0 : i32
    %c0_i32_0 = arith.constant 0 : i32
    return %arg0, %c0_i32 : i32, i32
  }
  func.func @transform_2(%arg0: i32) -> (i32, i32) {
    %c0_i32 = arith.constant 0 : i32
    %c0_i32_0 = arith.constant 0 : i32
    %c0_i32_1 = arith.constant 0 : i32
    return %c0_i32, %c0_i32_0 : i32, i32
  }
  func.func @transform_3(%arg0: i32) -> (i32, i32) {
    %c0_i32 = arith.constant 0 : i32
    %c0_i32_0 = arith.constant 0 : i32
    return %arg0, %c0_i32 : i32, i32
  }
}

</mosaic_0001>

<llo_original>
// kernel: tpu_custom_call.1
$region0: #{tpu_custom_call.1}
  #allocation0 [shape = 'u32[]', space=smem, size = 0x4, offset = 0x4, fixed_abs, tag = 'smem constant byte address 0x4 - core index']
  #allocation1 [shape = 'u32[144,128]{1,0:T(1,128)}', space=vmem, size = 0x12000, scoped, tag = 'internal scratch']
  %s0 = inlined_call_operand.vmem [shape: f32[24,32], index: 0, kind: input, shape index: {}]
  %s1 = inlined_call_operand.vmem [shape: f32[24,8], index: 1, kind: input, shape index: {}]
  %s2 = inlined_call_operand.vmem [shape: f32[120,32], index: 2, kind: input, shape index: {}]
  %s3 = inlined_call_operand.vmem [shape: f32[24,1], index: 3, kind: output, shape index: {}]
  %s4 = sld [smem:[#allocation0]]
  $region45: #{tpu_custom_call.1} parent=0
    _
  %s6 = ssub.s32 1, %s4
  %s7 = scalar_select 0, %s6, %s4
  loop: start=0, step=1, limit=5
  $region2: #{tpu_custom_call.1} parent=0 // loop_pre_header
    _
  $region3: #{tpu_custom_call.1} parent=0 // loop_header
    %s9 = sphi 0, %s13
    %p10 = scmp.ge.s32.totalorder %s9, 5
    %s19 = sphi 0, %s21
    %s22 = sphi 0, %s19
    %s23 = sphi 0, %s22
    %s39 = sphi 0, %s23
    %s45 = sphi 0, %s47
    %s48 = sphi 0, %s45
    %s49 = sphi 0, %s48
    %s65 = sphi 0, %s49
    %s69 = sphi 0, %s69
    %s71 = sphi 0, %s69
    %s72 = sphi 0, %s71
    %s86 = sphi 0, %s72
    %s92 = sphi 0, %s94
    %s95 = sphi 0, %s92
    %s96 = sphi 0, %s95
    %s112 = sphi 0, %s96
  $region4: #{tpu_custom_call.1} parent=0 // loop_header_branch
    %12 = sbr.rel (%p10) target = $region8
  $region5: #{tpu_custom_call.1} parent=0 // loop_body
    %s14 = ssub.s32 %s9, 1
    %s15 = ssub.s32 %s9, 2
    %s16 = sadd.s32 %s9, 1
    %s17 = ssub.s32 %s9, %s16
    %p18 = scmp.eq.s32.totalorder %s17, 0
    %s20 = sadd.s32 %s19, 1
    %s21 = scalar_select %p18, %s19, %s20
    %p24 = pneg %p18
    %p25 = scmp.eq.s32.totalorder %s9, 2
    %p26 = por %p24, %p25
    %p27 = scmp.ne.s32.totalorder %s19, %s22
    %p28 = scmp.eq.s32.totalorder %s9, 0
    %p29 = por %p27, %p28
    %p30 = scmp.ne.s32.totalorder %s19, %s22
    %p31 = scmp.eq.s32.totalorder %s14, 2
    %p32 = por %p30, %p31
    %p33 = scmp.ne.s32.totalorder %s22, %s23
    %p34 = scmp.eq.s32.totalorder %s14, 0
    %p35 = por %p33, %p34
    %p36 = scmp.ne.s32.totalorder %s22, %s23
    %p37 = scmp.eq.s32.totalorder %s15, 2
    %p38 = por %p36, %p37
    %p40 = scmp.ne.s32.totalorder %s23, %s39
    %p41 = scmp.eq.s32.totalorder %s15, 0
    %p42 = por %p40, %p41
    %s43 = ssub.s32 %s9, %s16
    %p44 = scmp.eq.s32.totalorder %s43, 0
    %s46 = sadd.s32 %s45, 1
    %s47 = scalar_select %p44, %s45, %s46
    %p50 = pneg %p44
    %p51 = scmp.eq.s32.totalorder %s9, 2
    %p52 = por %p50, %p51
    %p53 = scmp.ne.s32.totalorder %s45, %s48
    %p54 = scmp.eq.s32.totalorder %s9, 0
    %p55 = por %p53, %p54
    %p56 = scmp.ne.s32.totalorder %s45, %s48
    %p57 = scmp.eq.s32.totalorder %s14, 2
    %p58 = por %p56, %p57
    %p59 = scmp.ne.s32.totalorder %s48, %s49
    %p60 = scmp.eq.s32.totalorder %s14, 0
    %p61 = por %p59, %p60
    %p62 = scmp.ne.s32.totalorder %s48, %s49
    %p63 = scmp.eq.s32.totalorder %s15, 2
    %p64 = por %p62, %p63
    %p66 = scmp.ne.s32.totalorder %s49, %s65
    %p67 = scmp.eq.s32.totalorder %s15, 0
    %p68 = por %p66, %p67
    %s70 = sadd.s32 %s69, 1
    %p73 = scmp.eq.s32.totalorder %s9, 2
    %p74 = scmp.ne.s32.totalorder %s69, %s71
    %p75 = scmp.eq.s32.totalorder %s9, 0
    %p76 = por %p74, %p75
    %p77 = scmp.ne.s32.totalorder %s69, %s71
    %p78 = scmp.eq.s32.totalorder %s14, 2
    %p79 = por %p77, %p78
    %p80 = scmp.ne.s32.totalorder %s71, %s72
    %p81 = scmp.eq.s32.totalorder %s14, 0
    %p82 = por %p80, %p81
    %p83 = scmp.ne.s32.totalorder %s71, %s72
    %p84 = scmp.eq.s32.totalorder %s15, 2
    %p85 = por %p83, %p84
    %p87 = scmp.ne.s32.totalorder %s72, %s86
    %p88 = scmp.eq.s32.totalorder %s15, 0
    %p89 = por %p87, %p88
    %s90 = ssub.s32 %s9, %s16
    %p91 = scmp.eq.s32.totalorder %s90, 0
    %s93 = sadd.s32 %s92, 1
    %s94 = scalar_select %p91, %s92, %s93
    %p97 = pneg %p91
    %p98 = scmp.eq.s32.totalorder %s9, 2
    %p99 = por %p97, %p98
    %p100 = scmp.ne.s32.totalorder %s92, %s95
    %p101 = scmp.eq.s32.totalorder %s9, 0
    %p102 = por %p100, %p101
    %p103 = scmp.ne.s32.totalorder %s92, %s95
    %p104 = scmp.eq.s32.totalorder %s14, 2
    %p105 = por %p103, %p104
    %p106 = scmp.ne.s32.totalorder %s95, %s96
    %p107 = scmp.eq.s32.totalorder %s14, 0
    %p108 = por %p106, %p107
    %p109 = scmp.ne.s32.totalorder %s95, %s96
    %p110 = scmp.eq.s32.totalorder %s15, 2
    %p111 = por %p109, %p110
    %p113 = scmp.ne.s32.totalorder %s96, %s112
    %p114 = scmp.eq.s32.totalorder %s15, 0
    %p115 = por %p113, %p114
    %p116 = scmp.le.s32.totalorder 1, %s9
    %p117 = scmp.lt.s32.totalorder %s9, 4
    %p118 = pnand %p116, %p117
    %p119 = pneg %p118
    // Predicated region
    $region9: #{tpu_custom_call.1} parent=5 // pred_check
      _
    $region10: #{tpu_custom_call.1} parent=5 // pred_check_branch
      %121 = sbr.rel (%p118) target = $region12
    $region11: #{tpu_custom_call.1} parent=5 // pred_region
      %s122 = ssub.s32 %s9, 1
      // Predicated region
      $region13: #{tpu_custom_call.1} parent=11 // pred_check
        %p123 = pneg %p82
      $region14: #{tpu_custom_call.1} parent=11 // pred_check_branch
        %125 = sbr.rel (%p123) target = $region16
      $region15: #{tpu_custom_call.1} parent=11 // pred_region
        _
      $region16: #{tpu_custom_call.1} parent=11 // pred_fallthru
        _
    $region12: #{tpu_custom_call.1} parent=5 // pred_fallthru
      _
    %p126 = scmp.lt.s32.totalorder %s9, 3
    // Predicated region
    $region17: #{tpu_custom_call.1} parent=5 // pred_check
      %p127 = pneg %p126
    $region18: #{tpu_custom_call.1} parent=5 // pred_check_branch
      %129 = sbr.rel (%p127) target = $region20
    $region19: #{tpu_custom_call.1} parent=5 // pred_region
      // Predicated region
      $region21: #{tpu_custom_call.1} parent=19 // pred_check
        %p130 = pneg %p29
      $region22: #{tpu_custom_call.1} parent=19 // pred_check_branch
        %132 = sbr.rel (%p130) target = $region24
      $region23: #{tpu_custom_call.1} parent=19 // pred_region
        %p133 = scmp.lt.s32.totalorder %s9, 2
        %s134 = scalar_select %p133, %s9, 2
        %s135 = smul.addr %s134, 8
        %s136 = scalar_lea.vmem %s0, %s135
      $region24: #{tpu_custom_call.1} parent=19 // pred_fallthru
        _
      // Predicated region
      $region25: #{tpu_custom_call.1} parent=19 // pred_check
        %p137 = pneg %p55
      $region26: #{tpu_custom_call.1} parent=19 // pred_check_branch
        %139 = sbr.rel (%p137) target = $region28
      $region27: #{tpu_custom_call.1} parent=19 // pred_region
        %p140 = scmp.lt.s32.totalorder %s9, 2
        %s141 = scalar_select %p140, %s9, 2
        %s142 = smul.addr %s141, 8
        %s143 = scalar_lea.vmem %s1, %s142
      $region28: #{tpu_custom_call.1} parent=19 // pred_fallthru
        _
    $region20: #{tpu_custom_call.1} parent=5 // pred_fallthru
      _
    %p144 = scmp.le.s32.totalorder 1, %s9
    %p145 = scmp.lt.s32.totalorder %s9, 4
    %p146 = pnand %p144, %p145
    %p147 = pneg %p146
    // Predicated region
    $region29: #{tpu_custom_call.1} parent=5 // pred_check
      _
    $region30: #{tpu_custom_call.1} parent=5 // pred_check_branch
      %149 = sbr.rel (%p146) target = $region32
    $region31: #{tpu_custom_call.1} parent=5 // pred_region
      %s150 = ssub.s32 %s9, 1
      %p151 = scmp.lt.s32.totalorder %s14, 2
      %s152 = scalar_select %p151, %s14, 2
      %s153 = smul.addr %s152, 8
      %s154 = scalar_lea.vmem %s0, %s153
      %p155 = pneg %p35
      %p156 = pneg %p32
      %p157 = scmp.lt.s32.totalorder %s14, 2
      %s158 = scalar_select %p157, %s14, 2
      %s159 = smul.addr %s158, 8
      %s160 = scalar_lea.vmem %s1, %s159
      %p161 = pneg %p61
      %p162 = pneg %p58
      %p163 = pneg %p82
      %p164 = pneg %p79
      %p165 = pneg %p108
      %p166 = pneg %p105
      %p167 = scmp.lt.s32.totalorder %s14, 2
      %s168 = scalar_select %p167, %s14, 2
      %s169 = smul.addr %s168, 8
      %s170 = scalar_lea.vmem %s3, %s169
      %p171 = scmp.lt.s32.totalorder %s14, 2
      %s172 = scalar_select %p171, %s14, 2
      %s173 = smul.addr %s172, 8
      %s174 = scalar_lea.vmem %s0, %s173
      %p175 = scmp.lt.s32.totalorder %s14, 2
      %s176 = scalar_select %p175, %s14, 2
      %s177 = smul.addr %s176, 8
      %s178 = scalar_lea.vmem %s1, %s177
      %p179 = scmp.lt.s32.totalorder %s14, 2
      %s180 = scalar_select %p179, %s14, 2
      %s181 = smul.addr %s180, 8
      %s182 = scalar_lea.vmem %s3, %s181
      %v183 = vld [vmem:[%s174] sm:$0xff]
      %v184 = vld [vmem:[%s178] sm:$0xff]
      %v185 = vld [vmem:[%s2] sm:$0xff]
      %v186 = vld [vmem:[%s2 + $0x8] sm:$0xff]
      %v187 = vld [vmem:[%s2 + $0x10] sm:$0xff]
      %v188 = vld [vmem:[%s2 + $0x18] sm:$0xff]
      %v189 = vld [vmem:[%s2 + $0x20] sm:$0x1]
      %v190 = vlaneseq
      %v191 = vshrl.u32 %v190, 7
      %v192 = vsub.s32 0, %v191
      %v193 = vrot.slane %v189, %v192
      %vm194 = vcmask 261120
      %v196 = vsel %vm194, %v183, 0
      %198 = vmatprep.subr.mxu0 0.0
      %199 = vmatpush1.msra.mxu0 %v185
      %200 = vmatprep.subr.mxu0 0.0
      %201 = vmatpush1.msra.mxu0 %v186
      %202 = vmatprep.subr.mxu0 0.0
      %203 = vmatpush1.msra.mxu0 %v187
      %204 = vmatprep.subr.mxu0 0.0
      %205 = vmatpush1.msra.mxu0 %v188
      %206 = vmatprep.subr.mxu0 0.0
      %207 = vmatpush1.msra.mxu0 0.0
      %208 = vmatprep.subr.mxu0 0.0
      %209 = vmatpush1.msra.mxu0 0.0
      %210 = vmatprep.subr.mxu0 0.0
      %211 = vmatpush1.msra.mxu0 0.0
      %212 = vmatprep.subr.mxu0 0.0
      %213 = vmatpush1.msra.mxu0 0.0
      %214 = vmatprep.subr.mxu0 0.0
      %215 = vmatpush1.msra.mxu0 0.0
      %216 = vmatprep.subr.mxu0 0.0
      %217 = vmatpush1.msra.mxu0 0.0
      %218 = vmatprep.subr.mxu0 0.0
      %219 = vmatpush1.msra.mxu0 0.0
      %220 = vmatprep.subr.mxu0 0.0
      %221 = vmatpush1.msra.mxu0 0.0
      %222 = vmatprep.subr.mxu0 0.0
      %223 = vmatpush1.msra.mxu0 0.0
      %224 = vmatprep.subr.mxu0 0.0
      %225 = vmatpush1.msra.mxu0 0.0
      %226 = vmatprep.subr.mxu0 0.0
      %227 = vmatpush1.msra.mxu0 0.0
      %228 = vmatprep.subr.mxu0 0.0
      %229 = vmatpush1.msra.mxu0 0.0
      %230 = vmatprep.subr.mxu0 0.0
      %231 = vmatpush1.msra.mxu0 0.0
      %232 = vmatprep.subr.mxu0 0.0
      %233 = vmatpush1.msra.mxu0 0.0
      %234 = vmatprep.subr.mxu0 0.0
      %235 = vmatpush1.msra.mxu0 0.0
      %236 = vmatprep.subr.mxu0 0.0
      %237 = vmatpush1.msra.mxu0 0.0
      %238 = vmatprep.subr.mxu0 0.0
      %239 = vmatpush1.msra.mxu0 0.0
      %240 = vmatprep.subr.mxu0 0.0
      %241 = vmatpush1.msra.mxu0 0.0
      %242 = vmatprep.subr.mxu0 0.0
      %243 = vmatpush1.msra.mxu0 0.0
      %244 = vmatprep.subr.mxu0 0.0
      %245 = vmatpush1.msra.mxu0 0.0
      %246 = vmatprep.subr.mxu0 0.0
      %247 = vmatpush1.msra.mxu0 0.0
      %248 = vmatprep.subr.mxu0 0.0
      %249 = vmatpush1.msra.mxu0 0.0
      %250 = vmatprep.subr.mxu0 0.0
      %251 = vmatpush1.msra.mxu0 0.0
      %252 = vmatprep.subr.mxu0 0.0
      %253 = vmatpush1.msra.mxu0 0.0
      %254 = vmatprep.subr.mxu0 0.0
      %255 = vmatpush1.msra.mxu0 0.0
      %256 = vmatprep.subr.mxu0 0.0
      %257 = vmatpush1.msra.mxu0 0.0
      %258 = vmatprep.subr.mxu0 0.0
      %259 = vmatpush1.msra.mxu0 0.0
      %260 = vmatprep.subr.mxu0 0.0
      %261 = vmatpush1.msra.mxu0 0.0
      %262 = vmatprep.mubr.f32.mxu0 0.0
      %263 = vmatmul.mubr.f32.gmra.mrb[0].mxu0 %v196
      %v264 = vpop.f32.mrb[0].mxu0
      %v265 = vadd.f32 %v193, %v264
      %v266 = vpop.f32.mrb[0].mxu0
      %267 = vdwg.mxu0
      %v268 = vmax.f32 %v265, 0.0
      %270 = vrot.lane.b32.xlu0 %v184, 8
      %v271 = vpop.permute.xlu0 %270
      %vm273 = vcmask 64512
      %v274 = vsel %vm273, %v268, %v271
      %v275 = vld [vmem:[%s2 + $0x28] sm:$0xff]
      %v276 = vld [vmem:[%s2 + $0x30] sm:$0xff]
      %v277 = vld [vmem:[%s2 + $0x38] sm:$0x1]
      %v278 = vlaneseq
      %v279 = vshrl.u32 %v278, 7
      %v280 = vsub.s32 0, %v279
      %v281 = vrot.slane %v277, %v280
      %vm282 = vcmask 130048
      %v284 = vsel %vm282, %v274, 0
      %286 = vmatprep.subr.mxu0 0.0
      %287 = vmatpush1.msra.mxu0 %v275
      %288 = vmatprep.subr.mxu0 0.0
      %289 = vmatpush1.msra.mxu0 %v276
      %290 = vmatprep.subr.mxu0 0.0
      %291 = vmatpush1.msra.mxu0 0.0
      %292 = vmatprep.subr.mxu0 0.0
      %293 = vmatpush1.msra.mxu0 0.0
      %294 = vmatprep.subr.mxu0 0.0
      %295 = vmatpush1.msra.mxu0 0.0
      %296 = vmatprep.subr.mxu0 0.0
      %297 = vmatpush1.msra.mxu0 0.0
      %298 = vmatprep.subr.mxu0 0.0
      %299 = vmatpush1.msra.mxu0 0.0
      %300 = vmatprep.subr.mxu0 0.0
      %301 = vmatpush1.msra.mxu0 0.0
      %302 = vmatprep.subr.mxu0 0.0
      %303 = vmatpush1.msra.mxu0 0.0
      %304 = vmatprep.subr.mxu0 0.0
      %305 = vmatpush1.msra.mxu0 0.0
      %306 = vmatprep.subr.mxu0 0.0
      %307 = vmatpush1.msra.mxu0 0.0
      %308 = vmatprep.subr.mxu0 0.0
      %309 = vmatpush1.msra.mxu0 0.0
      %310 = vmatprep.subr.mxu0 0.0
      %311 = vmatpush1.msra.mxu0 0.0
      %312 = vmatprep.subr.mxu0 0.0
      %313 = vmatpush1.msra.mxu0 0.0
      %314 = vmatprep.subr.mxu0 0.0
      %315 = vmatpush1.msra.mxu0 0.0
      %316 = vmatprep.subr.mxu0 0.0
      %317 = vmatpush1.msra.mxu0 0.0
      %318 = vmatprep.subr.mxu0 0.0
      %319 = vmatpush1.msra.mxu0 0.0
      %320 = vmatprep.subr.mxu0 0.0
      %321 = vmatpush1.msra.mxu0 0.0
      %322 = vmatprep.subr.mxu0 0.0
      %323 = vmatpush1.msra.mxu0 0.0
      %324 = vmatprep.subr.mxu0 0.0
      %325 = vmatpush1.msra.mxu0 0.0
      %326 = vmatprep.subr.mxu0 0.0
      %327 = vmatpush1.msra.mxu0 0.0
      %328 = vmatprep.subr.mxu0 0.0
      %329 = vmatpush1.msra.mxu0 0.0
      %330 = vmatprep.subr.mxu0 0.0
      %331 = vmatpush1.msra.mxu0 0.0
      %332 = vmatprep.subr.mxu0 0.0
      %333 = vmatpush1.msra.mxu0 0.0
      %334 = vmatprep.subr.mxu0 0.0
      %335 = vmatpush1.msra.mxu0 0.0
      %336 = vmatprep.subr.mxu0 0.0
      %337 = vmatpush1.msra.mxu0 0.0
      %338 = vmatprep.subr.mxu0 0.0
      %339 = vmatpush1.msra.mxu0 0.0
      %340 = vmatprep.subr.mxu0 0.0
      %341 = vmatpush1.msra.mxu0 0.0
      %342 = vmatprep.subr.mxu0 0.0
      %343 = vmatpush1.msra.mxu0 0.0
      %344 = vmatprep.subr.mxu0 0.0
      %345 = vmatpush1.msra.mxu0 0.0
      %346 = vmatprep.subr.mxu0 0.0
      %347 = vmatpush1.msra.mxu0 0.0
      %348 = vmatprep.subr.mxu0 0.0
      %349 = vmatpush1.msra.mxu0 0.0
      %350 = vmatprep.mubr.f32.mxu0 0.0
      %351 = vmatmul.mubr.f32.gmra.mrb[0].mxu0 %v284
      %v352 = vpop.f32.mrb[0].mxu0
      %v353 = vadd.f32 %v281, %v352
      %v354 = vpop.f32.mrb[0].mxu0
      %355 = vdwg.mxu0
      %v356 = vmax.f32 %v353, 0.0
      %v357 = vld [vmem:[%s2 + $0x40] sm:$0xff]
      %v358 = vld [vmem:[%s2 + $0x48] sm:$0xff]
      %v359 = vld [vmem:[%s2 + $0x50] sm:$0xff]
      %v360 = vld [vmem:[%s2 + $0x58] sm:$0xff]
      %v361 = vld [vmem:[%s2 + $0x60] sm:$0x1]
      %v362 = vlaneseq
      %v363 = vshrl.u32 %v362, 7
      %v364 = vsub.s32 0, %v363
      %v365 = vrot.slane %v361, %v364
      %v367 = vsel %vm194, %v356, 0
      %369 = vmatprep.subr.mxu0 0.0
      %370 = vmatpush1.msra.mxu0 %v357
      %371 = vmatprep.subr.mxu0 0.0
      %372 = vmatpush1.msra.mxu0 %v358
      %373 = vmatprep.subr.mxu0 0.0
      %374 = vmatpush1.msra.mxu0 %v359
      %375 = vmatprep.subr.mxu0 0.0
      %376 = vmatpush1.msra.mxu0 %v360
      %377 = vmatprep.subr.mxu0 0.0
      %378 = vmatpush1.msra.mxu0 0.0
      %379 = vmatprep.subr.mxu0 0.0
      %380 = vmatpush1.msra.mxu0 0.0
      %381 = vmatprep.subr.mxu0 0.0
      %382 = vmatpush1.msra.mxu0 0.0
      %383 = vmatprep.subr.mxu0 0.0
      %384 = vmatpush1.msra.mxu0 0.0
      %385 = vmatprep.subr.mxu0 0.0
      %386 = vmatpush1.msra.mxu0 0.0
      %387 = vmatprep.subr.mxu0 0.0
      %388 = vmatpush1.msra.mxu0 0.0
      %389 = vmatprep.subr.mxu0 0.0
      %390 = vmatpush1.msra.mxu0 0.0
      %391 = vmatprep.subr.mxu0 0.0
      %392 = vmatpush1.msra.mxu0 0.0
      %393 = vmatprep.subr.mxu0 0.0
      %394 = vmatpush1.msra.mxu0 0.0
      %395 = vmatprep.subr.mxu0 0.0
      %396 = vmatpush1.msra.mxu0 0.0
      %397 = vmatprep.subr.mxu0 0.0
      %398 = vmatpush1.msra.mxu0 0.0
      %399 = vmatprep.subr.mxu0 0.0
      %400 = vmatpush1.msra.mxu0 0.0
      %401 = vmatprep.subr.mxu0 0.0
      %402 = vmatpush1.msra.mxu0 0.0
      %403 = vmatprep.subr.mxu0 0.0
      %404 = vmatpush1.msra.mxu0 0.0
      %405 = vmatprep.subr.mxu0 0.0
      %406 = vmatpush1.msra.mxu0 0.0
      %407 = vmatprep.subr.mxu0 0.0
      %408 = vmatpush1.msra.mxu0 0.0
      %409 = vmatprep.subr.mxu0 0.0
      %410 = vmatpush1.msra.mxu0 0.0
      %411 = vmatprep.subr.mxu0 0.0
      %412 = vmatpush1.msra.mxu0 0.0
      %413 = vmatprep.subr.mxu0 0.0
      %414 = vmatpush1.msra.mxu0 0.0
      %415 = vmatprep.subr.mxu0 0.0
      %416 = vmatpush1.msra.mxu0 0.0
      %417 = vmatprep.subr.mxu0 0.0
      %418 = vmatpush1.msra.mxu0 0.0
      %419 = vmatprep.subr.mxu0 0.0
      %420 = vmatpush1.msra.mxu0 0.0
      %421 = vmatprep.subr.mxu0 0.0
      %422 = vmatpush1.msra.mxu0 0.0
      %423 = vmatprep.subr.mxu0 0.0
      %424 = vmatpush1.msra.mxu0 0.0
      %425 = vmatprep.subr.mxu0 0.0
      %426 = vmatpush1.msra.mxu0 0.0
      %427 = vmatprep.subr.mxu0 0.0
      %428 = vmatpush1.msra.mxu0 0.0
      %429 = vmatprep.subr.mxu0 0.0
      %430 = vmatpush1.msra.mxu0 0.0
      %431 = vmatprep.subr.mxu0 0.0
      %432 = vmatpush1.msra.mxu0 0.0
      %433 = vmatprep.mubr.f32.mxu0 0.0
      %434 = vmatmul.mubr.f32.gmra.mrb[0].mxu0 %v367
      %v435 = vpop.f32.mrb[0].mxu0
      %v436 = vadd.f32 %v365, %v435
      %v437 = vpop.f32.mrb[0].mxu0
      %438 = vdwg.mxu0
      %v439 = vmax.f32 %v436, 0.0
      %v440 = vld [vmem:[%s2 + $0x68] sm:$0x1]
      %v441 = vld [vmem:[%s2 + $0x70] sm:$0x1]
      %v442 = vlaneseq
      %v443 = vshrl.u32 %v442, 7
      %v444 = vsub.s32 0, %v443
      %v445 = vrot.slane %v440, %v444
      %v446 = vmul.f32 %v439, %v445
      %v447 = vsel %vm282, %v446, 0.0
      %448 = vadd.xlane.f32.xlu0 %v447
      %v449 = vpop.xlane.xlu0 %448
      %v450 = vlaneseq
      %v451 = vshrl.u32 %v450, 7
      %v452 = vsub.s32 0, %v451
      %v453 = vrot.slane %v441, %v452
      %v454 = vadd.f32 %v449, %v453
      %vm455 = vcmask 7168
      %456 = vst.msk [vmem:[%s182] sm:$0xff] %vm455, %v454
      %p457 = scmp.lt.s32.totalorder %s14, 2
      %s458 = scalar_select %p457, %s14, 2
      %s459 = smul.addr %s458, 8
      %s460 = scalar_lea.vmem %s3, %s459
      // Predicated region
      $region33: #{tpu_custom_call.1} parent=31 // pred_check
        %p461 = pneg %p105
      $region34: #{tpu_custom_call.1} parent=31 // pred_check_branch
        %463 = sbr.rel (%p461) target = $region36
      $region35: #{tpu_custom_call.1} parent=31 // pred_region
        _
      $region36: #{tpu_custom_call.1} parent=31 // pred_fallthru
        _
    $region32: #{tpu_custom_call.1} parent=5 // pred_fallthru
      _
    %p464 = scmp.le.s32.totalorder 2, %s9
    // Predicated region
    $region37: #{tpu_custom_call.1} parent=5 // pred_check
      %p465 = pneg %p464
    $region38: #{tpu_custom_call.1} parent=5 // pred_check_branch
      %467 = sbr.rel (%p465) target = $region40
    $region39: #{tpu_custom_call.1} parent=5 // pred_region
      %s468 = ssub.s32 %s9, 2
      // Predicated region
      $region41: #{tpu_custom_call.1} parent=39 // pred_check
        %p469 = pneg %p111
      $region42: #{tpu_custom_call.1} parent=39 // pred_check_branch
        %471 = sbr.rel (%p469) target = $region44
      $region43: #{tpu_custom_call.1} parent=39 // pred_region
        %p472 = scmp.lt.s32.totalorder %s15, 2
        %s473 = scalar_select %p472, %s15, 2
        %s474 = smul.addr %s473, 8
        %s475 = scalar_lea.vmem %s3, %s474
      $region44: #{tpu_custom_call.1} parent=39 // pred_fallthru
        _
    $region40: #{tpu_custom_call.1} parent=5 // pred_fallthru
      _
  $region6: #{tpu_custom_call.1} parent=0 // loop_footer
    %s13 = sadd.s32 1, %s9
  $region7: #{tpu_custom_call.1} parent=0 // loop_footer_branch
    %8 = sbr.rel target = $region3
  $region8: #{tpu_custom_call.1} parent=0 // loop_exit
    _

</llo_original>
